<compile_context>
chip_gen: v6e
topology: v6e:2x2x1
jax: 0.10.0
libtpu: 0.0.40
codegen_flags: <defaults>
</compile_context>

<pallas_src>
import jax
import jax.numpy as jnp
from jax.experimental import pallas as pl
from jax.experimental.pallas import tpu as pltpu


# ---------------------------------------------------------------------------
# Fused Pallas kernel (built per layer sequence; sequence is static)
# ---------------------------------------------------------------------------
def _make_fused_interval_kernel(steps):
    """steps: tuple of "linear" / "relu" strings.

    Kernel ref layout: (l, u, [w, |w|, b] per linear ..., lo_out, hi_out).
    All layers execute inside one kernel body; intermediates live in vregs.
    """

    def kernel(*refs):
        l = refs[0][...]
        u = refs[1][...]
        pi = 2
        for s in steps:
            if s == "linear":
                w = refs[pi][...]
                w_abs = refs[pi + 1][...]
                b = refs[pi + 2][...]
                pi += 3
                mid = 0.5 * (l + u)
                rad = 0.5 * (u - l)
                out_mid = jnp.dot(mid, w, preferred_element_type=jnp.float32) + b
                out_rad = jnp.dot(rad, w_abs, preferred_element_type=jnp.float32)
                l = out_mid - out_rad
                u = out_mid + out_rad
            else:  # "relu" : monotone -> clamp both bounds independently (fused epilogue)
                l = jnp.maximum(l, 0.0)
                u = jnp.maximum(u, 0.0)
        lo_ref = refs[pi]
        hi_ref = refs[pi + 1]
        lo_ref[...] = l
        hi_ref[...] = u

    return kernel


def _round_up(x, m):
    return ((x + m - 1) // m) * m


# ---------------------------------------------------------------------------
# JAX/Pallas analogue of IntervalNetwork (layers_mask=None path)
# ---------------------------------------------------------------------------
class IntervalNetworkPallas:
    """`layers` is a list of ("linear", W[in,out], b[out]) / ("relu",) tuples mirroring
    the nn.Sequential built in the PyTorch __init__."""

    def __init__(self, layers, feat_pad=None):
        steps = []
        linear_params = []
        feat_dims = []
        for layer in layers:
            if layer[0] == "linear":
                _, w, b = layer
                steps.append("linear")
                linear_params.append((jnp.asarray(w, jnp.float32),
                                      jnp.asarray(b, jnp.float32)))
                feat_dims.extend(w.shape)
            elif layer[0] == "relu":
                steps.append("relu")
            else:
                raise NotImplementedError(layer[0])
        if not linear_params:
            raise NotImplementedError("need at least one linear layer")

        self.steps = tuple(steps)
        self.in_dim = linear_params[0][0].shape[0]
        self.out_dim = linear_params[-1][0].shape[1]

        # Pad every feature dim to a lane-dense multiple of 128 (single common width).
        if feat_pad is None:
            feat_pad = _round_up(max(feat_dims), 128)
        self.feat_pad = F = feat_pad

        # Precompute padded W, |W|, b once (weights are static across calls).
        padded = []
        for w, b in linear_params:
            fin, fout = w.shape
            wp = jnp.pad(w, ((0, F - fin), (0, F - fout)))
            bp = jnp.pad(b, (0, F - fout)).reshape(1, F)
            padded.append((wp, jnp.abs(wp), bp))
        self._flat_params = tuple(p for triple in padded for p in triple)

        kernel = _make_fused_interval_kernel(self.steps)
        n_inputs = 2 + len(self._flat_params)
        vmem_spec = pl.BlockSpec(memory_space=pltpu.MemorySpace.VMEM)

        def _forward(lower, upper):
            B, fin = lower.shape
            lp = jnp.pad(lower.astype(jnp.float32), ((0, 0), (0, F - fin)))
            up = jnp.pad(upper.astype(jnp.float32), ((0, 0), (0, F - fin)))
            lo_p, hi_p = pl.pallas_call(
                kernel,
                out_shape=(
                    jax.ShapeDtypeStruct((B, F), jnp.float32),
                    jax.ShapeDtypeStruct((B, F), jnp.float32),
                ),
                in_specs=[vmem_spec] * n_inputs,
                out_specs=(vmem_spec, vmem_spec),
            )(lp, up, *self._flat_params)
            return lo_p[:, : self.out_dim], hi_p[:, : self.out_dim]

        self._forward = jax.jit(_forward)

    def forward(self, lower, upper):
        return self._forward(lower, upper)

    def evaluate(self, x):
        # Point evaluation == interval with zero radius.
        # TODO(synk): point-eval fast path could skip the rad @ |W| matmuls entirely.
        lo, _ = self.forward(x, x)
        return lo


# ---------------------------------------------------------------------------
# Pure-JAX reference for correctness checking
# ---------------------------------------------------------------------------
def _ref_forward(layers, lower, upper):
    l, u = lower, upper
    for layer in layers:
        if layer[0] == "linear":
            _, w, b = layer
            mid = 0.5 * (l + u)
            rad = 0.5 * (u - l)
            om = mid @ w + b
            orad = rad @ jnp.abs(w)
            l, u = om - orad, om + orad
        else:
            l, u = jnp.maximum(l, 0.0), jnp.maximum(u, 0.0)
    return l, u


if __name__ == "__main__":
    key = jax.random.PRNGKey(0)
    k_x, k_w1, k_b1, k_w2, k_b2, k_w3, k_b3 = jax.random.split(key, 7)

    batch, d_in, d_hidden, d_out = 8, 64, 32, 16

    # Deterministic synthetic parameters (module __init__ would wrap a trained model).
    w1 = 0.1 * jax.random.normal(k_w1, (d_in, d_hidden), dtype=jnp.float32)
    b1 = 0.1 * jax.random.normal(k_b1, (d_hidden,), dtype=jnp.float32)
    w2 = 0.1 * jax.random.normal(k_w2, (d_hidden, d_hidden), dtype=jnp.float32)
    b2 = 0.1 * jax.random.normal(k_b2, (d_hidden,), dtype=jnp.float32)
    w3 = 0.1 * jax.random.normal(k_w3, (d_hidden, d_out), dtype=jnp.float32)
    b3 = 0.1 * jax.random.normal(k_b3, (d_out,), dtype=jnp.float32)

    layers = [
        ("linear", w1, b1),
        ("relu",),
        ("linear", w2, b2),
        ("relu",),
        ("linear", w3, b3),
    ]
    net = IntervalNetworkPallas(layers)

    # Input interval: x +/- eps  (the `input_interval` of the PyTorch module).
    x = jax.random.normal(k_x, (batch, d_in), dtype=jnp.float32)
    eps = jnp.float32(0.1)
    lower_in = x - eps
    upper_in = x + eps

    lo, hi = net.forward(lower_in, upper_in)
    lo = jax.block_until_ready(lo)
    hi = jax.block_until_ready(hi)

    ref_lo, ref_hi = _ref_forward(layers, lower_in, upper_in)
    assert lo.shape == (batch, d_out) and hi.shape == (batch, d_out)
    assert jnp.allclose(lo, ref_lo, atol=1e-5, rtol=1e-5)
    assert jnp.allclose(hi, ref_hi, atol=1e-5, rtol=1e-5)
    assert bool(jnp.all(hi >= lo))  # interval soundness (f32 throughout)

    # Point evaluation path (zero-radius interval) matches a plain forward pass.
    y_point = jax.block_until_ready(net.evaluate(x))
    ref_point, _ = _ref_forward(layers, x, x)
    assert jnp.allclose(y_point, ref_point, atol=1e-5, rtol=1e-5)

    print("KERNEL_OK")
</pallas_src>

<mosaic_0001>
module attributes {stable_mosaic.version = 11 : i64} {
  func.func @kernel(%arg0: memref<8x128xf32, #tpu.memory_space<vmem>>, %arg1: memref<8x128xf32, #tpu.memory_space<vmem>>, %arg2: memref<128x128xf32, #tpu.memory_space<vmem>>, %arg3: memref<128x128xf32, #tpu.memory_space<vmem>>, %arg4: memref<1x128xf32, #tpu.memory_space<vmem>>, %arg5: memref<128x128xf32, #tpu.memory_space<vmem>>, %arg6: memref<128x128xf32, #tpu.memory_space<vmem>>, %arg7: memref<1x128xf32, #tpu.memory_space<vmem>>, %arg8: memref<128x128xf32, #tpu.memory_space<vmem>>, %arg9: memref<128x128xf32, #tpu.memory_space<vmem>>, %arg10: memref<1x128xf32, #tpu.memory_space<vmem>>, %arg11: memref<8x128xf32, #tpu.memory_space<vmem>>, %arg12: memref<8x128xf32, #tpu.memory_space<vmem>>) attributes {dimension_semantics = [], scalar_prefetch = 0 : i64, scratch_operands = 0 : i64, tpu.core_type = #tpu.core_type<tc>} {
    %c0 = arith.constant 0 : index
    %c0_0 = arith.constant 0 : index
    %0 = vector.load %arg0[%c0, %c0_0] : memref<8x128xf32, #tpu.memory_space<vmem>>, vector<8x128xf32>
    %c0_1 = arith.constant 0 : index
    %c0_2 = arith.constant 0 : index
    %1 = vector.load %arg1[%c0_1, %c0_2] : memref<8x128xf32, #tpu.memory_space<vmem>>, vector<8x128xf32>
    %c0_3 = arith.constant 0 : index
    %c0_4 = arith.constant 0 : index
    %2 = vector.load %arg2[%c0_3, %c0_4] : memref<128x128xf32, #tpu.memory_space<vmem>>, vector<128x128xf32>
    %c0_5 = arith.constant 0 : index
    %c0_6 = arith.constant 0 : index
    %3 = vector.load %arg3[%c0_5, %c0_6] : memref<128x128xf32, #tpu.memory_space<vmem>>, vector<128x128xf32>
    %c0_7 = arith.constant 0 : index
    %c0_8 = arith.constant 0 : index
    %4 = vector.load %arg4[%c0_7, %c0_8] : memref<1x128xf32, #tpu.memory_space<vmem>>, vector<1x128xf32>
    %5 = arith.addf %0, %1 : vector<8x128xf32>
    %cst = arith.constant 5.000000e-01 : f32
    %6 = vector.broadcast %cst : f32 to vector<8x128xf32>
    %7 = arith.mulf %6, %5 : vector<8x128xf32>
    %8 = arith.subf %1, %0 : vector<8x128xf32>
    %cst_9 = arith.constant 5.000000e-01 : f32
    %9 = vector.broadcast %cst_9 : f32 to vector<8x128xf32>
    %10 = arith.mulf %9, %8 : vector<8x128xf32>
    %cst_10 = arith.constant dense<0.000000e+00> : vector<8x128xf32>
    %11 = tpu.matmul %7, %2, %cst_10 {dimension_numbers = #tpu.dot_dimension_numbers<[1], [0], [0], [1], [0, 0, 1, 1], [], []>} : vector<8x128xf32>, vector<128x128xf32>, vector<8x128xf32> -> vector<8x128xf32>
    %12 = vector.broadcast %4 : vector<1x128xf32> to vector<8x128xf32>
    %13 = arith.addf %11, %12 : vector<8x128xf32>
    %cst_11 = arith.constant dense<0.000000e+00> : vector<8x128xf32>
    %14 = tpu.matmul %10, %3, %cst_11 {dimension_numbers = #tpu.dot_dimension_numbers<[1], [0], [0], [1], [0, 0, 1, 1], [], []>} : vector<8x128xf32>, vector<128x128xf32>, vector<8x128xf32> -> vector<8x128xf32>
    %15 = arith.subf %13, %14 : vector<8x128xf32>
    %16 = arith.addf %13, %14 : vector<8x128xf32>
    %cst_12 = arith.constant 0.000000e+00 : f32
    %17 = vector.broadcast %cst_12 : f32 to vector<8x128xf32>
    %18 = arith.maximumf %15, %17 : vector<8x128xf32>
    %cst_13 = arith.constant 0.000000e+00 : f32
    %19 = vector.broadcast %cst_13 : f32 to vector<8x128xf32>
    %20 = arith.maximumf %16, %19 : vector<8x128xf32>
    %c0_14 = arith.constant 0 : index
    %c0_15 = arith.constant 0 : index
    %21 = vector.load %arg5[%c0_14, %c0_15] : memref<128x128xf32, #tpu.memory_space<vmem>>, vector<128x128xf32>
    %c0_16 = arith.constant 0 : index
    %c0_17 = arith.constant 0 : index
    %22 = vector.load %arg6[%c0_16, %c0_17] : memref<128x128xf32, #tpu.memory_space<vmem>>, vector<128x128xf32>
    %c0_18 = arith.constant 0 : index
    %c0_19 = arith.constant 0 : index
    %23 = vector.load %arg7[%c0_18, %c0_19] : memref<1x128xf32, #tpu.memory_space<vmem>>, vector<1x128xf32>
    %24 = arith.addf %18, %20 : vector<8x128xf32>
    %cst_20 = arith.constant 5.000000e-01 : f32
    %25 = vector.broadcast %cst_20 : f32 to vector<8x128xf32>
    %26 = arith.mulf %25, %24 : vector<8x128xf32>
    %27 = arith.subf %20, %18 : vector<8x128xf32>
    %cst_21 = arith.constant 5.000000e-01 : f32
    %28 = vector.broadcast %cst_21 : f32 to vector<8x128xf32>
    %29 = arith.mulf %28, %27 : vector<8x128xf32>
    %cst_22 = arith.constant dense<0.000000e+00> : vector<8x128xf32>
    %30 = tpu.matmul %26, %21, %cst_22 {dimension_numbers = #tpu.dot_dimension_numbers<[1], [0], [0], [1], [0, 0, 1, 1], [], []>} : vector<8x128xf32>, vector<128x128xf32>, vector<8x128xf32> -> vector<8x128xf32>
    %31 = vector.broadcast %23 : vector<1x128xf32> to vector<8x128xf32>
    %32 = arith.addf %30, %31 : vector<8x128xf32>
    %cst_23 = arith.constant dense<0.000000e+00> : vector<8x128xf32>
    %33 = tpu.matmul %29, %22, %cst_23 {dimension_numbers = #tpu.dot_dimension_numbers<[1], [0], [0], [1], [0, 0, 1, 1], [], []>} : vector<8x128xf32>, vector<128x128xf32>, vector<8x128xf32> -> vector<8x128xf32>
    %34 = arith.subf %32, %33 : vector<8x128xf32>
    %35 = arith.addf %32, %33 : vector<8x128xf32>
    %cst_24 = arith.constant 0.000000e+00 : f32
    %36 = vector.broadcast %cst_24 : f32 to vector<8x128xf32>
    %37 = arith.maximumf %34, %36 : vector<8x128xf32>
    %cst_25 = arith.constant 0.000000e+00 : f32
    %38 = vector.broadcast %cst_25 : f32 to vector<8x128xf32>
    %39 = arith.maximumf %35, %38 : vector<8x128xf32>
    %c0_26 = arith.constant 0 : index
    %c0_27 = arith.constant 0 : index
    %40 = vector.load %arg8[%c0_26, %c0_27] : memref<128x128xf32, #tpu.memory_space<vmem>>, vector<128x128xf32>
    %c0_28 = arith.constant 0 : index
    %c0_29 = arith.constant 0 : index
    %41 = vector.load %arg9[%c0_28, %c0_29] : memref<128x128xf32, #tpu.memory_space<vmem>>, vector<128x128xf32>
    %c0_30 = arith.constant 0 : index
    %c0_31 = arith.constant 0 : index
    %42 = vector.load %arg10[%c0_30, %c0_31] : memref<1x128xf32, #tpu.memory_space<vmem>>, vector<1x128xf32>
    %43 = arith.addf %37, %39 : vector<8x128xf32>
    %cst_32 = arith.constant 5.000000e-01 : f32
    %44 = vector.broadcast %cst_32 : f32 to vector<8x128xf32>
    %45 = arith.mulf %44, %43 : vector<8x128xf32>
    %46 = arith.subf %39, %37 : vector<8x128xf32>
    %cst_33 = arith.constant 5.000000e-01 : f32
    %47 = vector.broadcast %cst_33 : f32 to vector<8x128xf32>
    %48 = arith.mulf %47, %46 : vector<8x128xf32>
    %cst_34 = arith.constant dense<0.000000e+00> : vector<8x128xf32>
    %49 = tpu.matmul %45, %40, %cst_34 {dimension_numbers = #tpu.dot_dimension_numbers<[1], [0], [0], [1], [0, 0, 1, 1], [], []>} : vector<8x128xf32>, vector<128x128xf32>, vector<8x128xf32> -> vector<8x128xf32>
    %50 = vector.broadcast %42 : vector<1x128xf32> to vector<8x128xf32>
    %51 = arith.addf %49, %50 : vector<8x128xf32>
    %cst_35 = arith.constant dense<0.000000e+00> : vector<8x128xf32>
    %52 = tpu.matmul %48, %41, %cst_35 {dimension_numbers = #tpu.dot_dimension_numbers<[1], [0], [0], [1], [0, 0, 1, 1], [], []>} : vector<8x128xf32>, vector<128x128xf32>, vector<8x128xf32> -> vector<8x128xf32>
    %53 = arith.subf %51, %52 : vector<8x128xf32>
    %54 = arith.addf %51, %52 : vector<8x128xf32>
    %c0_36 = arith.constant 0 : index
    %c0_37 = arith.constant 0 : index
    %55 = vector.load %arg11[%c0_36, %c0_37] : memref<8x128xf32, #tpu.memory_space<vmem>>, vector<8x128xf32>
    tpu.vector_store %arg11[%c0_36, %c0_37], %53 {strides = array<i32>} : memref<8x128xf32, #tpu.memory_space<vmem>>, vector<8x128xf32>,
    %c0_38 = arith.constant 0 : index
    %c0_39 = arith.constant 0 : index
    %56 = vector.load %arg12[%c0_38, %c0_39] : memref<8x128xf32, #tpu.memory_space<vmem>>, vector<8x128xf32>
    tpu.vector_store %arg12[%c0_38, %c0_39], %54 {strides = array<i32>} : memref<8x128xf32, #tpu.memory_space<vmem>>, vector<8x128xf32>,
    return
  }
}

</mosaic_0001>

<llo_original>
// kernel: _forward.1
$region0: #{_forward.1}
  #allocation0 [shape = 'u32[]', space=smem, size = 0x4, offset = 0x4, fixed_abs, tag = 'smem constant byte address 0x4 - core index']
  #allocation1 [shape = 'u32[144,128]{1,0:T(1,128)}', space=vmem, size = 0x12000, scoped, tag = 'internal scratch']
  %s0 = inlined_call_operand.vmem [shape: f32[8,128], index: 0, kind: input, shape index: {}]
  %s1 = inlined_call_operand.vmem [shape: f32[8,128], index: 1, kind: input, shape index: {}]
  %s2 = inlined_call_operand.hbm [shape: f32[128,128], index: 2, kind: input, shape index: {}]
  %s3 = inlined_call_operand.hbm [shape: f32[128,128], index: 3, kind: input, shape index: {}]
  %s4 = inlined_call_operand.vmem [shape: f32[1,128], index: 4, kind: input, shape index: {}]
  %s5 = inlined_call_operand.hbm [shape: f32[128,128], index: 5, kind: input, shape index: {}]
  %s6 = inlined_call_operand.hbm [shape: f32[128,128], index: 6, kind: input, shape index: {}]
  %s7 = inlined_call_operand.vmem [shape: f32[1,128], index: 7, kind: input, shape index: {}]
  %s8 = inlined_call_operand.hbm [shape: f32[128,128], index: 8, kind: input, shape index: {}]
  %s9 = inlined_call_operand.hbm [shape: f32[128,128], index: 9, kind: input, shape index: {}]
  %s10 = inlined_call_operand.vmem [shape: f32[1,128], index: 10, kind: input, shape index: {}]
  %s11 = inlined_call_operand.hbm [shape: f32[8,128], index: 11, kind: output, shape index: {0}]
  %s12 = inlined_call_operand.hbm [shape: f32[8,128], index: 12, kind: output, shape index: {1}]
  %13 = xla_tuple %s11, %s12
  %s14 = sld [smem:[#allocation0]]
  $region86: #{_forward.1} parent=0
    _
  %s16 = ssub.s32 1, %s14
  %s17 = scalar_select 0, %s16, %s14
  $region1: #{_forward.1} parent=0
    #allocation2 [shape = 'u8[65536]{0}', space=vmem, size = 0x10000, scoped, tag = 'input window, operand 2, single buffered']
    #allocation3 [shape = 's32[1]{0}', space=sflag, size = 0x4, scoped, tag = 'scoped memory for _forward.1']
    #allocation4 [shape = 's32[1]{0}', space=sflag, size = 0x4, scoped, tag = 'scoped memory for _forward.1']
    #allocation5 [shape = 'u8[65536]{0}', space=vmem, size = 0x10000, scoped, tag = 'input window, operand 3, single buffered']
    #allocation6 [shape = 's32[1]{0}', space=sflag, size = 0x4, scoped, tag = 'scoped memory for _forward.1']
    #allocation7 [shape = 'u8[65536]{0}', space=vmem, size = 0x10000, scoped, tag = 'input window, operand 5, single buffered']
    #allocation8 [shape = 'u8[65536]{0}', space=vmem, size = 0x10000, scoped, tag = 'input window, operand 6, single buffered']
    #allocation9 [shape = 's32[1]{0}', space=sflag, size = 0x4, scoped, tag = 'scoped memory for _forward.1']
    #allocation10 [shape = 'u8[65536]{0}', space=vmem, size = 0x10000, scoped, tag = 'input window, operand 8, single buffered']
    #allocation11 [shape = 'u8[65536]{0}', space=vmem, size = 0x10000, scoped, tag = 'input window, operand 9, single buffered']
    #allocation12 [shape = 's32[1]{0}', space=sflag, size = 0x4, scoped, tag = 'scoped memory for _forward.1']
    #allocation13 [shape = 'u8[4096]{0}', space=vmem, size = 0x1000, scoped, tag = 'output window, operand 0, single buffered']
    #allocation14 [shape = 'u8[4096]{0}', space=vmem, size = 0x1000, scoped, tag = 'output window, operand 1, single buffered']
    #allocation15 [shape = 's32[1]{0}', space=sflag, size = 0x4, scoped, tag = 'scoped memory for _forward.1']
    %18 = vsyncpa [#allocation3], 0
    %19 = vsyncpa [#allocation6], 0
    %20 = vsyncpa [#allocation9], 0
    %21 = vsyncpa [#allocation12], 0
    %22 = vsyncpa [#allocation4], 0
    %23 = vsyncpa [#allocation15], 0
    // Predicated region
    $region2: #{_forward.1} parent=1 // pred_check
      _
    $region3: #{_forward.1} parent=1 // pred_check_branch
      %25 = sbr.rel (0) target = $region5
    $region4: #{_forward.1} parent=1 // pred_region
      _
    $region5: #{_forward.1} parent=1 // pred_fallthru
      _
    // Predicated region
    $region6: #{_forward.1} parent=1 // pred_check
      _
    $region7: #{_forward.1} parent=1 // pred_check_branch
      %27 = sbr.rel (0) target = $region9
    $region8: #{_forward.1} parent=1 // pred_region
      _
    $region9: #{_forward.1} parent=1 // pred_fallthru
      _
    // Predicated region
    $region10: #{_forward.1} parent=1 // pred_check
      _
    $region11: #{_forward.1} parent=1 // pred_check_branch
      %29 = sbr.rel (0) target = $region13
    $region12: #{_forward.1} parent=1 // pred_region
      %s31 = ssub.s32 2048, 2048
      %32 = vsyncadd [#allocation3], %s31
      %s33 = sshll.u32 [#allocation2], 4
      %s34 = int_to_ptr.vmem [resolvable:$true] %s33
      %39 = dma.hbm_to_vmem [thread:$0]  %s2, 2048, %s34, [#allocation3], 128, 128, 8
    $region13: #{_forward.1} parent=1 // pred_fallthru
      _
    // Predicated region
    $region14: #{_forward.1} parent=1 // pred_check
      _
    $region15: #{_forward.1} parent=1 // pred_check_branch
      %41 = sbr.rel (0) target = $region17
    $region16: #{_forward.1} parent=1 // pred_region
      %s43 = ssub.s32 2048, 2048
      %44 = vsyncadd [#allocation6], %s43
      %s45 = sshll.u32 [#allocation5], 4
      %s46 = int_to_ptr.vmem [resolvable:$true] %s45
      %51 = dma.hbm_to_vmem [thread:$0]  %s3, 2048, %s46, [#allocation6], 128, 128, 8
    $region17: #{_forward.1} parent=1 // pred_fallthru
      _
    // Predicated region
    $region18: #{_forward.1} parent=1 // pred_check
      _
    $region19: #{_forward.1} parent=1 // pred_check_branch
      %53 = sbr.rel (0) target = $region21
    $region20: #{_forward.1} parent=1 // pred_region
      _
    $region21: #{_forward.1} parent=1 // pred_fallthru
      _
    // Predicated region
    $region22: #{_forward.1} parent=1 // pred_check
      _
    $region23: #{_forward.1} parent=1 // pred_check_branch
      %55 = sbr.rel (0) target = $region25
    $region24: #{_forward.1} parent=1 // pred_region
      %s57 = ssub.s32 2048, 2048
      %58 = vsyncadd [#allocation6], %s57
      %s59 = sshll.u32 [#allocation7], 4
      %s60 = int_to_ptr.vmem [resolvable:$true] %s59
      %65 = dma.hbm_to_vmem [thread:$0]  %s5, 2048, %s60, [#allocation6], 128, 128, 8
    $region25: #{_forward.1} parent=1 // pred_fallthru
      _
    // Predicated region
    $region26: #{_forward.1} parent=1 // pred_check
      _
    $region27: #{_forward.1} parent=1 // pred_check_branch
      %67 = sbr.rel (0) target = $region29
    $region28: #{_forward.1} parent=1 // pred_region
      %s69 = ssub.s32 2048, 2048
      %70 = vsyncadd [#allocation9], %s69
      %s71 = sshll.u32 [#allocation8], 4
      %s72 = int_to_ptr.vmem [resolvable:$true] %s71
      %77 = dma.hbm_to_vmem [thread:$0]  %s6, 2048, %s72, [#allocation9], 128, 128, 8
    $region29: #{_forward.1} parent=1 // pred_fallthru
      _
    // Predicated region
    $region30: #{_forward.1} parent=1 // pred_check
      _
    $region31: #{_forward.1} parent=1 // pred_check_branch
      %79 = sbr.rel (0) target = $region33
    $region32: #{_forward.1} parent=1 // pred_region
      _
    $region33: #{_forward.1} parent=1 // pred_fallthru
      _
    // Predicated region
    $region34: #{_forward.1} parent=1 // pred_check
      _
    $region35: #{_forward.1} parent=1 // pred_check_branch
      %81 = sbr.rel (0) target = $region37
    $region36: #{_forward.1} parent=1 // pred_region
      %s83 = ssub.s32 2048, 2048
      %84 = vsyncadd [#allocation9], %s83
      %s85 = sshll.u32 [#allocation10], 4
      %s86 = int_to_ptr.vmem [resolvable:$true] %s85
      %91 = dma.hbm_to_vmem [thread:$0]  %s8, 2048, %s86, [#allocation9], 128, 128, 8
    $region37: #{_forward.1} parent=1 // pred_fallthru
      _
    // Predicated region
    $region38: #{_forward.1} parent=1 // pred_check
      _
    $region39: #{_forward.1} parent=1 // pred_check_branch
      %93 = sbr.rel (0) target = $region41
    $region40: #{_forward.1} parent=1 // pred_region
      %s95 = ssub.s32 2048, 2048
      %96 = vsyncadd [#allocation12], %s95
      %s97 = sshll.u32 [#allocation11], 4
      %s98 = int_to_ptr.vmem [resolvable:$true] %s97
      %103 = dma.hbm_to_vmem [thread:$0]  %s9, 2048, %s98, [#allocation12], 128, 128, 8
    $region41: #{_forward.1} parent=1 // pred_fallthru
      _
    // Predicated region
    $region42: #{_forward.1} parent=1 // pred_check
      _
    $region43: #{_forward.1} parent=1 // pred_check_branch
      %105 = sbr.rel (0) target = $region45
    $region44: #{_forward.1} parent=1 // pred_region
      _
    $region45: #{_forward.1} parent=1 // pred_fallthru
      _
    // Predicated region
    $region46: #{_forward.1} parent=1 // pred_check
      _
    $region47: #{_forward.1} parent=1 // pred_check_branch
      %107 = sbr.rel (0) target = $region49
    $region48: #{_forward.1} parent=1 // pred_region
      %108 = dma.done [#allocation3], 2048
    $region49: #{_forward.1} parent=1 // pred_fallthru
      _
    // Predicated region
    $region50: #{_forward.1} parent=1 // pred_check
      _
    $region51: #{_forward.1} parent=1 // pred_check_branch
      %110 = sbr.rel (0) target = $region53
    $region52: #{_forward.1} parent=1 // pred_region
      %111 = dma.done [#allocation6], 2048
    $region53: #{_forward.1} parent=1 // pred_fallthru
      _
    // Predicated region
    $region54: #{_forward.1} parent=1 // pred_check
      _
    $region55: #{_forward.1} parent=1 // pred_check_branch
      %113 = sbr.rel (0) target = $region57
    $region56: #{_forward.1} parent=1 // pred_region
      %114 = dma.done [#allocation6], 2048
    $region57: #{_forward.1} parent=1 // pred_fallthru
      _
    // Predicated region
    $region58: #{_forward.1} parent=1 // pred_check
      _
    $region59: #{_forward.1} parent=1 // pred_check_branch
      %116 = sbr.rel (0) target = $region61
    $region60: #{_forward.1} parent=1 // pred_region
      %117 = dma.done [#allocation9], 2048
    $region61: #{_forward.1} parent=1 // pred_fallthru
      _
    // Predicated region
    $region62: #{_forward.1} parent=1 // pred_check
      _
    $region63: #{_forward.1} parent=1 // pred_check_branch
      %119 = sbr.rel (0) target = $region65
    $region64: #{_forward.1} parent=1 // pred_region
      %120 = dma.done [#allocation9], 2048
    $region65: #{_forward.1} parent=1 // pred_fallthru
      _
    // Predicated region
    $region66: #{_forward.1} parent=1 // pred_check
      _
    $region67: #{_forward.1} parent=1 // pred_check_branch
      %122 = sbr.rel (0) target = $region69
    $region68: #{_forward.1} parent=1 // pred_region
      %123 = dma.done [#allocation12], 2048
    $region69: #{_forward.1} parent=1 // pred_fallthru
      _
    %v124 = vld [vmem:[%s0] sm:$0xff]
    %v125 = vld [vmem:[%s1] sm:$0xff]
    %v126 = vld [vmem:[#allocation2] sm:$0xff]
    %v127 = vld [vmem:[#allocation2 + $0x8] sm:$0xff]
    %v128 = vld [vmem:[#allocation2 + $0x10] sm:$0xff]
    %v129 = vld [vmem:[#allocation2 + $0x18] sm:$0xff]
    %v130 = vld [vmem:[#allocation2 + $0x20] sm:$0xff]
    %v131 = vld [vmem:[#allocation2 + $0x28] sm:$0xff]
    %v132 = vld [vmem:[#allocation2 + $0x30] sm:$0xff]
    %v133 = vld [vmem:[#allocation2 + $0x38] sm:$0xff]
    %v134 = vld [vmem:[#allocation2 + $0x40] sm:$0xff]
    %v135 = vld [vmem:[#allocation2 + $0x48] sm:$0xff]
    %v136 = vld [vmem:[#allocation2 + $0x50] sm:$0xff]
    %v137 = vld [vmem:[#allocation2 + $0x58] sm:$0xff]
    %v138 = vld [vmem:[#allocation2 + $0x60] sm:$0xff]
    %v139 = vld [vmem:[#allocation2 + $0x68] sm:$0xff]
    %v140 = vld [vmem:[#allocation2 + $0x70] sm:$0xff]
    %v141 = vld [vmem:[#allocation2 + $0x78] sm:$0xff]
    %v142 = vld [vmem:[#allocation5] sm:$0xff]
    %v143 = vld [vmem:[#allocation5 + $0x8] sm:$0xff]
    %v144 = vld [vmem:[#allocation5 + $0x10] sm:$0xff]
    %v145 = vld [vmem:[#allocation5 + $0x18] sm:$0xff]
    %v146 = vld [vmem:[#allocation5 + $0x20] sm:$0xff]
    %v147 = vld [vmem:[#allocation5 + $0x28] sm:$0xff]
    %v148 = vld [vmem:[#allocation5 + $0x30] sm:$0xff]
    %v149 = vld [vmem:[#allocation5 + $0x38] sm:$0xff]
    %v150 = vld [vmem:[#allocation5 + $0x40] sm:$0xff]
    %v151 = vld [vmem:[#allocation5 + $0x48] sm:$0xff]
    %v152 = vld [vmem:[#allocation5 + $0x50] sm:$0xff]
    %v153 = vld [vmem:[#allocation5 + $0x58] sm:$0xff]
    %v154 = vld [vmem:[#allocation5 + $0x60] sm:$0xff]
    %v155 = vld [vmem:[#allocation5 + $0x68] sm:$0xff]
    %v156 = vld [vmem:[#allocation5 + $0x70] sm:$0xff]
    %v157 = vld [vmem:[#allocation5 + $0x78] sm:$0xff]
    %v158 = vld [vmem:[%s4] sm:$0x1]
    %v159 = vadd.f32 %v124, %v125
    %v160 = vmul.f32 %v159, 0.5
    %v161 = vsub.f32 %v125, %v124
    %v162 = vmul.f32 %v161, 0.5
    %v164 = vlaneseq
    %v165 = vshrl.u32 %v164, 7
    %v166 = vsub.s32 0, %v165
    %v167 = vrot.slane %v158, %v166
    %169 = vmatprep.subr.mxu0 0.0
    %170 = vmatpush1.msra.mxu0 %v141
    %171 = vmatprep.subr.mxu0 0.0
    %172 = vmatpush1.msra.mxu0 %v140
    %173 = vmatprep.subr.mxu0 0.0
    %174 = vmatpush1.msra.mxu0 %v139
    %175 = vmatprep.subr.mxu0 0.0
    %176 = vmatpush1.msra.mxu0 %v138
    %177 = vmatprep.subr.mxu0 0.0
    %178 = vmatpush1.msra.mxu0 %v137
    %179 = vmatprep.subr.mxu0 0.0
    %180 = vmatpush1.msra.mxu0 %v136
    %181 = vmatprep.subr.mxu0 0.0
    %182 = vmatpush1.msra.mxu0 %v135
    %183 = vmatprep.subr.mxu0 0.0
    %184 = vmatpush1.msra.mxu0 %v134
    %185 = vmatprep.subr.mxu0 0.0
    %186 = vmatpush1.msra.mxu0 %v133
    %187 = vmatprep.subr.mxu0 0.0
    %188 = vmatpush1.msra.mxu0 %v132
    %189 = vmatprep.subr.mxu0 0.0
    %190 = vmatpush1.msra.mxu0 %v131
    %191 = vmatprep.subr.mxu0 0.0
    %192 = vmatpush1.msra.mxu0 %v130
    %193 = vmatprep.subr.mxu0 0.0
    %194 = vmatpush1.msra.mxu0 %v129
    %195 = vmatprep.subr.mxu0 0.0
    %196 = vmatpush1.msra.mxu0 %v128
    %197 = vmatprep.subr.mxu0 0.0
    %198 = vmatpush1.msra.mxu0 %v127
    %199 = vmatprep.subr.mxu0 0.0
    %200 = vmatpush1.msra.mxu0 %v126
    %201 = vmatprep.subr.mxu0 0.0
    %202 = vmatpush2.msra.mxu0 0.0
    %203 = vmatprep.subr.mxu0 0.0
    %204 = vmatpush2.msra.mxu0 0.0
    %205 = vmatprep.subr.mxu0 0.0
    %206 = vmatpush2.msra.mxu0 0.0
    %207 = vmatprep.subr.mxu0 0.0
    %208 = vmatpush2.msra.mxu0 0.0
    %209 = vmatprep.subr.mxu0 0.0
    %210 = vmatpush2.msra.mxu0 0.0
    %211 = vmatprep.subr.mxu0 0.0
    %212 = vmatpush2.msra.mxu0 0.0
    %213 = vmatprep.subr.mxu0 0.0
    %214 = vmatpush2.msra.mxu0 0.0
    %215 = vmatprep.subr.mxu0 0.0
    %216 = vmatpush2.msra.mxu0 0.0
    %217 = vmatprep.subr.mxu0 0.0
    %218 = vmatpush2.msra.mxu0 0.0
    %219 = vmatprep.subr.mxu0 0.0
    %220 = vmatpush2.msra.mxu0 0.0
    %221 = vmatprep.subr.mxu0 0.0
    %222 = vmatpush2.msra.mxu0 0.0
    %223 = vmatprep.subr.mxu0 0.0
    %224 = vmatpush2.msra.mxu0 0.0
    %225 = vmatprep.subr.mxu0 0.0
    %226 = vmatpush2.msra.mxu0 0.0
    %227 = vmatprep.subr.mxu0 0.0
    %228 = vmatpush2.msra.mxu0 0.0
    %229 = vmatprep.subr.mxu0 0.0
    %230 = vmatpush2.msra.mxu0 0.0
    %231 = vmatprep.subr.mxu0 0.0
    %232 = vmatpush2.msra.mxu0 0.0
    %233 = vmatprep.mubr.f32.mxu0 0.0
    %234 = vmatmul.mubr.f32.gmra.mxu0 %v160
    %v235 = vpop.f32.mrf.mxu0
    %v236 = vadd.f32 %v167, %v235
    %v237 = vpop.f32.mrf.mxu0
    %238 = vdwg.mxu0
    %239 = vmatprep.subr.mxu0 0.0
    %240 = vmatpush1.msra.mxu0 %v157
    %241 = vmatprep.subr.mxu0 0.0
    %242 = vmatpush1.msra.mxu0 %v156
    %243 = vmatprep.subr.mxu0 0.0
    %244 = vmatpush1.msra.mxu0 %v155
    %245 = vmatprep.subr.mxu0 0.0
    %246 = vmatpush1.msra.mxu0 %v154
    %247 = vmatprep.subr.mxu0 0.0
    %248 = vmatpush1.msra.mxu0 %v153
    %249 = vmatprep.subr.mxu0 0.0
    %250 = vmatpush1.msra.mxu0 %v152
    %251 = vmatprep.subr.mxu0 0.0
    %252 = vmatpush1.msra.mxu0 %v151
    %253 = vmatprep.subr.mxu0 0.0
    %254 = vmatpush1.msra.mxu0 %v150
    %255 = vmatprep.subr.mxu0 0.0
    %256 = vmatpush1.msra.mxu0 %v149
    %257 = vmatprep.subr.mxu0 0.0
    %258 = vmatpush1.msra.mxu0 %v148
    %259 = vmatprep.subr.mxu0 0.0
    %260 = vmatpush1.msra.mxu0 %v147
    %261 = vmatprep.subr.mxu0 0.0
    %262 = vmatpush1.msra.mxu0 %v146
    %263 = vmatprep.subr.mxu0 0.0
    %264 = vmatpush1.msra.mxu0 %v145
    %265 = vmatprep.subr.mxu0 0.0
    %266 = vmatpush1.msra.mxu0 %v144
    %267 = vmatprep.subr.mxu0 0.0
    %268 = vmatpush1.msra.mxu0 %v143
    %269 = vmatprep.subr.mxu0 0.0
    %270 = vmatpush1.msra.mxu0 %v142
    %271 = vmatprep.subr.mxu0 0.0
    %272 = vmatpush2.msra.mxu0 0.0
    %273 = vmatprep.subr.mxu0 0.0
    %274 = vmatpush2.msra.mxu0 0.0
    %275 = vmatprep.subr.mxu0 0.0
    %276 = vmatpush2.msra.mxu0 0.0
    %277 = vmatprep.subr.mxu0 0.0
    %278 = vmatpush2.msra.mxu0 0.0
    %279 = vmatprep.subr.mxu0 0.0
    %280 = vmatpush2.msra.mxu0 0.0
    %281 = vmatprep.subr.mxu0 0.0
    %282 = vmatpush2.msra.mxu0 0.0
    %283 = vmatprep.subr.mxu0 0.0
    %284 = vmatpush2.msra.mxu0 0.0
    %285 = vmatprep.subr.mxu0 0.0
    %286 = vmatpush2.msra.mxu0 0.0
    %287 = vmatprep.subr.mxu0 0.0
    %288 = vmatpush2.msra.mxu0 0.0
    %289 = vmatprep.subr.mxu0 0.0
    %290 = vmatpush2.msra.mxu0 0.0
    %291 = vmatprep.subr.mxu0 0.0
    %292 = vmatpush2.msra.mxu0 0.0
    %293 = vmatprep.subr.mxu0 0.0
    %294 = vmatpush2.msra.mxu0 0.0
    %295 = vmatprep.subr.mxu0 0.0
    %296 = vmatpush2.msra.mxu0 0.0
    %297 = vmatprep.subr.mxu0 0.0
    %298 = vmatpush2.msra.mxu0 0.0
    %299 = vmatprep.subr.mxu0 0.0
    %300 = vmatpush2.msra.mxu0 0.0
    %301 = vmatprep.subr.mxu0 0.0
    %302 = vmatpush2.msra.mxu0 0.0
    %303 = vmatprep.mubr.f32.mxu0 0.0
    %304 = vmatmul.mubr.f32.gmra.mxu0 %v162
    %v305 = vpop.f32.mrf.mxu0
    %v306 = vadd.f32 0.0, %v305
    %v307 = vpop.f32.mrf.mxu0
    %308 = vdwg.mxu0
    %v309 = vsub.f32 %v236, %v306
    %v310 = vadd.f32 %v236, %v306
    %v311 = vmax.f32 %v309, 0.0
    %v312 = vmax.f32 %v310, 0.0
    %v313 = vld [vmem:[#allocation7] sm:$0xff]
    %v314 = vld [vmem:[#allocation7 + $0x8] sm:$0xff]
    %v315 = vld [vmem:[#allocation7 + $0x10] sm:$0xff]
    %v316 = vld [vmem:[#allocation7 + $0x18] sm:$0xff]
    %v317 = vld [vmem:[#allocation7 + $0x20] sm:$0xff]
    %v318 = vld [vmem:[#allocation7 + $0x28] sm:$0xff]
    %v319 = vld [vmem:[#allocation7 + $0x30] sm:$0xff]
    %v320 = vld [vmem:[#allocation7 + $0x38] sm:$0xff]
    %v321 = vld [vmem:[#allocation7 + $0x40] sm:$0xff]
    %v322 = vld [vmem:[#allocation7 + $0x48] sm:$0xff]
    %v323 = vld [vmem:[#allocation7 + $0x50] sm:$0xff]
    %v324 = vld [vmem:[#allocation7 + $0x58] sm:$0xff]
    %v325 = vld [vmem:[#allocation7 + $0x60] sm:$0xff]
    %v326 = vld [vmem:[#allocation7 + $0x68] sm:$0xff]
    %v327 = vld [vmem:[#allocation7 + $0x70] sm:$0xff]
    %v328 = vld [vmem:[#allocation7 + $0x78] sm:$0xff]
    %v329 = vld [vmem:[#allocation8] sm:$0xff]
    %v330 = vld [vmem:[#allocation8 + $0x8] sm:$0xff]
    %v331 = vld [vmem:[#allocation8 + $0x10] sm:$0xff]
    %v332 = vld [vmem:[#allocation8 + $0x18] sm:$0xff]
    %v333 = vld [vmem:[#allocation8 + $0x20] sm:$0xff]
    %v334 = vld [vmem:[#allocation8 + $0x28] sm:$0xff]
    %v335 = vld [vmem:[#allocation8 + $0x30] sm:$0xff]
    %v336 = vld [vmem:[#allocation8 + $0x38] sm:$0xff]
    %v337 = vld [vmem:[#allocation8 + $0x40] sm:$0xff]
    %v338 = vld [vmem:[#allocation8 + $0x48] sm:$0xff]
    %v339 = vld [vmem:[#allocation8 + $0x50] sm:$0xff]
    %v340 = vld [vmem:[#allocation8 + $0x58] sm:$0xff]
    %v341 = vld [vmem:[#allocation8 + $0x60] sm:$0xff]
    %v342 = vld [vmem:[#allocation8 + $0x68] sm:$0xff]
    %v343 = vld [vmem:[#allocation8 + $0x70] sm:$0xff]
    %v344 = vld [vmem:[#allocation8 + $0x78] sm:$0xff]
    %v345 = vld [vmem:[%s7] sm:$0x1]
    %v346 = vadd.f32 %v311, %v312
    %v347 = vmul.f32 %v346, 0.5
    %v348 = vsub.f32 %v312, %v311
    %v349 = vmul.f32 %v348, 0.5
    %v351 = vlaneseq
    %v352 = vshrl.u32 %v351, 7
    %v353 = vsub.s32 0, %v352
    %v354 = vrot.slane %v345, %v353
    %356 = vmatprep.subr.mxu0 0.0
    %357 = vmatpush1.msra.mxu0 %v328
    %358 = vmatprep.subr.mxu0 0.0
    %359 = vmatpush1.msra.mxu0 %v327
    %360 = vmatprep.subr.mxu0 0.0
    %361 = vmatpush1.msra.mxu0 %v326
    %362 = vmatprep.subr.mxu0 0.0
    %363 = vmatpush1.msra.mxu0 %v325
    %364 = vmatprep.subr.mxu0 0.0
    %365 = vmatpush1.msra.mxu0 %v324
    %366 = vmatprep.subr.mxu0 0.0
    %367 = vmatpush1.msra.mxu0 %v323
    %368 = vmatprep.subr.mxu0 0.0
    %369 = vmatpush1.msra.mxu0 %v322
    %370 = vmatprep.subr.mxu0 0.0
    %371 = vmatpush1.msra.mxu0 %v321
    %372 = vmatprep.subr.mxu0 0.0
    %373 = vmatpush1.msra.mxu0 %v320
    %374 = vmatprep.subr.mxu0 0.0
    %375 = vmatpush1.msra.mxu0 %v319
    %376 = vmatprep.subr.mxu0 0.0
    %377 = vmatpush1.msra.mxu0 %v318
    %378 = vmatprep.subr.mxu0 0.0
    %379 = vmatpush1.msra.mxu0 %v317
    %380 = vmatprep.subr.mxu0 0.0
    %381 = vmatpush1.msra.mxu0 %v316
    %382 = vmatprep.subr.mxu0 0.0
    %383 = vmatpush1.msra.mxu0 %v315
    %384 = vmatprep.subr.mxu0 0.0
    %385 = vmatpush1.msra.mxu0 %v314
    %386 = vmatprep.subr.mxu0 0.0
    %387 = vmatpush1.msra.mxu0 %v313
    %388 = vmatprep.subr.mxu0 0.0
    %389 = vmatpush2.msra.mxu0 0.0
    %390 = vmatprep.subr.mxu0 0.0
    %391 = vmatpush2.msra.mxu0 0.0
    %392 = vmatprep.subr.mxu0 0.0
    %393 = vmatpush2.msra.mxu0 0.0
    %394 = vmatprep.subr.mxu0 0.0
    %395 = vmatpush2.msra.mxu0 0.0
    %396 = vmatprep.subr.mxu0 0.0
    %397 = vmatpush2.msra.mxu0 0.0
    %398 = vmatprep.subr.mxu0 0.0
    %399 = vmatpush2.msra.mxu0 0.0
    %400 = vmatprep.subr.mxu0 0.0
    %401 = vmatpush2.msra.mxu0 0.0
    %402 = vmatprep.subr.mxu0 0.0
    %403 = vmatpush2.msra.mxu0 0.0
    %404 = vmatprep.subr.mxu0 0.0
    %405 = vmatpush2.msra.mxu0 0.0
    %406 = vmatprep.subr.mxu0 0.0
    %407 = vmatpush2.msra.mxu0 0.0
    %408 = vmatprep.subr.mxu0 0.0
    %409 = vmatpush2.msra.mxu0 0.0
    %410 = vmatprep.subr.mxu0 0.0
    %411 = vmatpush2.msra.mxu0 0.0
    %412 = vmatprep.subr.mxu0 0.0
    %413 = vmatpush2.msra.mxu0 0.0
    %414 = vmatprep.subr.mxu0 0.0
    %415 = vmatpush2.msra.mxu0 0.0
    %416 = vmatprep.subr.mxu0 0.0
    %417 = vmatpush2.msra.mxu0 0.0
    %418 = vmatprep.subr.mxu0 0.0
    %419 = vmatpush2.msra.mxu0 0.0
    %420 = vmatprep.mubr.f32.mxu0 0.0
    %421 = vmatmul.mubr.f32.gmra.mxu0 %v347
    %v422 = vpop.f32.mrf.mxu0
    %v423 = vadd.f32 %v354, %v422
    %v424 = vpop.f32.mrf.mxu0
    %425 = vdwg.mxu0
    %426 = vmatprep.subr.mxu0 0.0
    %427 = vmatpush1.msra.mxu0 %v344
    %428 = vmatprep.subr.mxu0 0.0
    %429 = vmatpush1.msra.mxu0 %v343
    %430 = vmatprep.subr.mxu0 0.0
    %431 = vmatpush1.msra.mxu0 %v342
    %432 = vmatprep.subr.mxu0 0.0
    %433 = vmatpush1.msra.mxu0 %v341
    %434 = vmatprep.subr.mxu0 0.0
    %435 = vmatpush1.msra.mxu0 %v340
    %436 = vmatprep.subr.mxu0 0.0
    %437 = vmatpush1.msra.mxu0 %v339
    %438 = vmatprep.subr.mxu0 0.0
    %439 = vmatpush1.msra.mxu0 %v338
    %440 = vmatprep.subr.mxu0 0.0
    %441 = vmatpush1.msra.mxu0 %v337
    %442 = vmatprep.subr.mxu0 0.0
    %443 = vmatpush1.msra.mxu0 %v336
    %444 = vmatprep.subr.mxu0 0.0
    %445 = vmatpush1.msra.mxu0 %v335
    %446 = vmatprep.subr.mxu0 0.0
    %447 = vmatpush1.msra.mxu0 %v334
    %448 = vmatprep.subr.mxu0 0.0
    %449 = vmatpush1.msra.mxu0 %v333
    %450 = vmatprep.subr.mxu0 0.0
    %451 = vmatpush1.msra.mxu0 %v332
    %452 = vmatprep.subr.mxu0 0.0
    %453 = vmatpush1.msra.mxu0 %v331
    %454 = vmatprep.subr.mxu0 0.0
    %455 = vmatpush1.msra.mxu0 %v330
    %456 = vmatprep.subr.mxu0 0.0
    %457 = vmatpush1.msra.mxu0 %v329
    %458 = vmatprep.subr.mxu0 0.0
    %459 = vmatpush2.msra.mxu0 0.0
    %460 = vmatprep.subr.mxu0 0.0
    %461 = vmatpush2.msra.mxu0 0.0
    %462 = vmatprep.subr.mxu0 0.0
    %463 = vmatpush2.msra.mxu0 0.0
    %464 = vmatprep.subr.mxu0 0.0
    %465 = vmatpush2.msra.mxu0 0.0
    %466 = vmatprep.subr.mxu0 0.0
    %467 = vmatpush2.msra.mxu0 0.0
    %468 = vmatprep.subr.mxu0 0.0
    %469 = vmatpush2.msra.mxu0 0.0
    %470 = vmatprep.subr.mxu0 0.0
    %471 = vmatpush2.msra.mxu0 0.0
    %472 = vmatprep.subr.mxu0 0.0
    %473 = vmatpush2.msra.mxu0 0.0
    %474 = vmatprep.subr.mxu0 0.0
    %475 = vmatpush2.msra.mxu0 0.0
    %476 = vmatprep.subr.mxu0 0.0
    %477 = vmatpush2.msra.mxu0 0.0
    %478 = vmatprep.subr.mxu0 0.0
    %479 = vmatpush2.msra.mxu0 0.0
    %480 = vmatprep.subr.mxu0 0.0
    %481 = vmatpush2.msra.mxu0 0.0
    %482 = vmatprep.subr.mxu0 0.0
    %483 = vmatpush2.msra.mxu0 0.0
    %484 = vmatprep.subr.mxu0 0.0
    %485 = vmatpush2.msra.mxu0 0.0
    %486 = vmatprep.subr.mxu0 0.0
    %487 = vmatpush2.msra.mxu0 0.0
    %488 = vmatprep.subr.mxu0 0.0
    %489 = vmatpush2.msra.mxu0 0.0
    %490 = vmatprep.mubr.f32.mxu0 0.0
    %491 = vmatmul.mubr.f32.gmra.mxu0 %v349
    %v492 = vpop.f32.mrf.mxu0
    %v493 = vadd.f32 0.0, %v492
    %v494 = vpop.f32.mrf.mxu0
    %495 = vdwg.mxu0
    %v496 = vsub.f32 %v423, %v493
    %v497 = vadd.f32 %v423, %v493
    %v498 = vmax.f32 %v496, 0.0
    %v499 = vmax.f32 %v497, 0.0
    %v500 = vld [vmem:[#allocation10] sm:$0xff]
    %v501 = vld [vmem:[#allocation10 + $0x8] sm:$0xff]
    %v502 = vld [vmem:[#allocation10 + $0x10] sm:$0xff]
    %v503 = vld [vmem:[#allocation10 + $0x18] sm:$0xff]
    %v504 = vld [vmem:[#allocation10 + $0x20] sm:$0xff]
    %v505 = vld [vmem:[#allocation10 + $0x28] sm:$0xff]
    %v506 = vld [vmem:[#allocation10 + $0x30] sm:$0xff]
    %v507 = vld [vmem:[#allocation10 + $0x38] sm:$0xff]
    %v508 = vld [vmem:[#allocation10 + $0x40] sm:$0xff]
    %v509 = vld [vmem:[#allocation10 + $0x48] sm:$0xff]
    %v510 = vld [vmem:[#allocation10 + $0x50] sm:$0xff]
    %v511 = vld [vmem:[#allocation10 + $0x58] sm:$0xff]
    %v512 = vld [vmem:[#allocation10 + $0x60] sm:$0xff]
    %v513 = vld [vmem:[#allocation10 + $0x68] sm:$0xff]
    %v514 = vld [vmem:[#allocation10 + $0x70] sm:$0xff]
    %v515 = vld [vmem:[#allocation10 + $0x78] sm:$0xff]
    %v516 = vld [vmem:[#allocation11] sm:$0xff]
    %v517 = vld [vmem:[#allocation11 + $0x8] sm:$0xff]
    %v518 = vld [vmem:[#allocation11 + $0x10] sm:$0xff]
    %v519 = vld [vmem:[#allocation11 + $0x18] sm:$0xff]
    %v520 = vld [vmem:[#allocation11 + $0x20] sm:$0xff]
    %v521 = vld [vmem:[#allocation11 + $0x28] sm:$0xff]
    %v522 = vld [vmem:[#allocation11 + $0x30] sm:$0xff]
    %v523 = vld [vmem:[#allocation11 + $0x38] sm:$0xff]
    %v524 = vld [vmem:[#allocation11 + $0x40] sm:$0xff]
    %v525 = vld [vmem:[#allocation11 + $0x48] sm:$0xff]
    %v526 = vld [vmem:[#allocation11 + $0x50] sm:$0xff]
    %v527 = vld [vmem:[#allocation11 + $0x58] sm:$0xff]
    %v528 = vld [vmem:[#allocation11 + $0x60] sm:$0xff]
    %v529 = vld [vmem:[#allocation11 + $0x68] sm:$0xff]
    %v530 = vld [vmem:[#allocation11 + $0x70] sm:$0xff]
    %v531 = vld [vmem:[#allocation11 + $0x78] sm:$0xff]
    %v532 = vld [vmem:[%s10] sm:$0x1]
    %v533 = vadd.f32 %v498, %v499
    %v534 = vmul.f32 %v533, 0.5
    %v535 = vsub.f32 %v499, %v498
    %v536 = vmul.f32 %v535, 0.5
    %v538 = vlaneseq
    %v539 = vshrl.u32 %v538, 7
    %v540 = vsub.s32 0, %v539
    %v541 = vrot.slane %v532, %v540
    %543 = vmatprep.subr.mxu0 0.0
    %544 = vmatpush1.msra.mxu0 %v515
    %545 = vmatprep.subr.mxu0 0.0
    %546 = vmatpush1.msra.mxu0 %v514
    %547 = vmatprep.subr.mxu0 0.0
    %548 = vmatpush1.msra.mxu0 %v513
    %549 = vmatprep.subr.mxu0 0.0
    %550 = vmatpush1.msra.mxu0 %v512
    %551 = vmatprep.subr.mxu0 0.0
    %552 = vmatpush1.msra.mxu0 %v511
    %553 = vmatprep.subr.mxu0 0.0
    %554 = vmatpush1.msra.mxu0 %v510
    %555 = vmatprep.subr.mxu0 0.0
    %556 = vmatpush1.msra.mxu0 %v509
    %557 = vmatprep.subr.mxu0 0.0
    %558 = vmatpush1.msra.mxu0 %v508
    %559 = vmatprep.subr.mxu0 0.0
    %560 = vmatpush1.msra.mxu0 %v507
    %561 = vmatprep.subr.mxu0 0.0
    %562 = vmatpush1.msra.mxu0 %v506
    %563 = vmatprep.subr.mxu0 0.0
    %564 = vmatpush1.msra.mxu0 %v505
    %565 = vmatprep.subr.mxu0 0.0
    %566 = vmatpush1.msra.mxu0 %v504
    %567 = vmatprep.subr.mxu0 0.0
    %568 = vmatpush1.msra.mxu0 %v503
    %569 = vmatprep.subr.mxu0 0.0
    %570 = vmatpush1.msra.mxu0 %v502
    %571 = vmatprep.subr.mxu0 0.0
    %572 = vmatpush1.msra.mxu0 %v501
    %573 = vmatprep.subr.mxu0 0.0
    %574 = vmatpush1.msra.mxu0 %v500
    %575 = vmatprep.subr.mxu0 0.0
    %576 = vmatpush2.msra.mxu0 0.0
    %577 = vmatprep.subr.mxu0 0.0
    %578 = vmatpush2.msra.mxu0 0.0
    %579 = vmatprep.subr.mxu0 0.0
    %580 = vmatpush2.msra.mxu0 0.0
    %581 = vmatprep.subr.mxu0 0.0
    %582 = vmatpush2.msra.mxu0 0.0
    %583 = vmatprep.subr.mxu0 0.0
    %584 = vmatpush2.msra.mxu0 0.0
    %585 = vmatprep.subr.mxu0 0.0
    %586 = vmatpush2.msra.mxu0 0.0
    %587 = vmatprep.subr.mxu0 0.0
    %588 = vmatpush2.msra.mxu0 0.0
    %589 = vmatprep.subr.mxu0 0.0
    %590 = vmatpush2.msra.mxu0 0.0
    %591 = vmatprep.subr.mxu0 0.0
    %592 = vmatpush2.msra.mxu0 0.0
    %593 = vmatprep.subr.mxu0 0.0
    %594 = vmatpush2.msra.mxu0 0.0
    %595 = vmatprep.subr.mxu0 0.0
    %596 = vmatpush2.msra.mxu0 0.0
    %597 = vmatprep.subr.mxu0 0.0
    %598 = vmatpush2.msra.mxu0 0.0
    %599 = vmatprep.subr.mxu0 0.0
    %600 = vmatpush2.msra.mxu0 0.0
    %601 = vmatprep.subr.mxu0 0.0
    %602 = vmatpush2.msra.mxu0 0.0
    %603 = vmatprep.subr.mxu0 0.0
    %604 = vmatpush2.msra.mxu0 0.0
    %605 = vmatprep.subr.mxu0 0.0
    %606 = vmatpush2.msra.mxu0 0.0
    %607 = vmatprep.mubr.f32.mxu0 0.0
    %608 = vmatmul.mubr.f32.gmra.mxu0 %v534
    %v609 = vpop.f32.mrf.mxu0
    %v610 = vadd.f32 %v541, %v609
    %v611 = vpop.f32.mrf.mxu0
    %612 = vdwg.mxu0
    %613 = vmatprep.subr.mxu0 0.0
    %614 = vmatpush1.msra.mxu0 %v531
    %615 = vmatprep.subr.mxu0 0.0
    %616 = vmatpush1.msra.mxu0 %v530
    %617 = vmatprep.subr.mxu0 0.0
    %618 = vmatpush1.msra.mxu0 %v529
    %619 = vmatprep.subr.mxu0 0.0
    %620 = vmatpush1.msra.mxu0 %v528
    %621 = vmatprep.subr.mxu0 0.0
    %622 = vmatpush1.msra.mxu0 %v527
    %623 = vmatprep.subr.mxu0 0.0
    %624 = vmatpush1.msra.mxu0 %v526
    %625 = vmatprep.subr.mxu0 0.0
    %626 = vmatpush1.msra.mxu0 %v525
    %627 = vmatprep.subr.mxu0 0.0
    %628 = vmatpush1.msra.mxu0 %v524
    %629 = vmatprep.subr.mxu0 0.0
    %630 = vmatpush1.msra.mxu0 %v523
    %631 = vmatprep.subr.mxu0 0.0
    %632 = vmatpush1.msra.mxu0 %v522
    %633 = vmatprep.subr.mxu0 0.0
    %634 = vmatpush1.msra.mxu0 %v521
    %635 = vmatprep.subr.mxu0 0.0
    %636 = vmatpush1.msra.mxu0 %v520
    %637 = vmatprep.subr.mxu0 0.0
    %638 = vmatpush1.msra.mxu0 %v519
    %639 = vmatprep.subr.mxu0 0.0
    %640 = vmatpush1.msra.mxu0 %v518
    %641 = vmatprep.subr.mxu0 0.0
    %642 = vmatpush1.msra.mxu0 %v517
    %643 = vmatprep.subr.mxu0 0.0
    %644 = vmatpush1.msra.mxu0 %v516
    %645 = vmatprep.subr.mxu0 0.0
    %646 = vmatpush2.msra.mxu0 0.0
    %647 = vmatprep.subr.mxu0 0.0
    %648 = vmatpush2.msra.mxu0 0.0
    %649 = vmatprep.subr.mxu0 0.0
    %650 = vmatpush2.msra.mxu0 0.0
    %651 = vmatprep.subr.mxu0 0.0
    %652 = vmatpush2.msra.mxu0 0.0
    %653 = vmatprep.subr.mxu0 0.0
    %654 = vmatpush2.msra.mxu0 0.0
    %655 = vmatprep.subr.mxu0 0.0
    %656 = vmatpush2.msra.mxu0 0.0
    %657 = vmatprep.subr.mxu0 0.0
    %658 = vmatpush2.msra.mxu0 0.0
    %659 = vmatprep.subr.mxu0 0.0
    %660 = vmatpush2.msra.mxu0 0.0
    %661 = vmatprep.subr.mxu0 0.0
    %662 = vmatpush2.msra.mxu0 0.0
    %663 = vmatprep.subr.mxu0 0.0
    %664 = vmatpush2.msra.mxu0 0.0
    %665 = vmatprep.subr.mxu0 0.0
    %666 = vmatpush2.msra.mxu0 0.0
    %667 = vmatprep.subr.mxu0 0.0
    %668 = vmatpush2.msra.mxu0 0.0
    %669 = vmatprep.subr.mxu0 0.0
    %670 = vmatpush2.msra.mxu0 0.0
    %671 = vmatprep.subr.mxu0 0.0
    %672 = vmatpush2.msra.mxu0 0.0
    %673 = vmatprep.subr.mxu0 0.0
    %674 = vmatpush2.msra.mxu0 0.0
    %675 = vmatprep.subr.mxu0 0.0
    %676 = vmatpush2.msra.mxu0 0.0
    %677 = vmatprep.mubr.f32.mxu0 0.0
    %678 = vmatmul.mubr.f32.gmra.mxu0 %v536
    %v679 = vpop.f32.mrf.mxu0
    %v680 = vadd.f32 0.0, %v679
    %v681 = vpop.f32.mrf.mxu0
    %682 = vdwg.mxu0
    %v683 = vsub.f32 %v610, %v680
    %v684 = vadd.f32 %v610, %v680
    %685 = vst [vmem:[#allocation13] sm:$0xff] %v683
    %686 = vst [vmem:[#allocation14] sm:$0xff] %v684
    // Predicated region
    $region70: #{_forward.1} parent=1 // pred_check
      _
    $region71: #{_forward.1} parent=1 // pred_check_branch
      %688 = sbr.rel (0) target = $region73
    $region72: #{_forward.1} parent=1 // pred_region
      %s690 = ssub.s32 128, 128
      %691 = vsyncadd [#allocation4], %s690
      %s693 = sshll.u32 [#allocation13], 4
      %s694 = int_to_ptr.vmem [resolvable:$true] %s693
      %696 = dma.vmem_to_hbm [thread:$0]  %s694, 128, %s11, [#allocation4]
    $region73: #{_forward.1} parent=1 // pred_fallthru
      _
    // Predicated region
    $region74: #{_forward.1} parent=1 // pred_check
      _
    $region75: #{_forward.1} parent=1 // pred_check_branch
      %698 = sbr.rel (0) target = $region77
    $region76: #{_forward.1} parent=1 // pred_region
      %s700 = ssub.s32 128, 128
      %701 = vsyncadd [#allocation15], %s700
      %s703 = sshll.u32 [#allocation14], 4
      %s704 = int_to_ptr.vmem [resolvable:$true] %s703
      %706 = dma.vmem_to_hbm [thread:$0]  %s704, 128, %s12, [#allocation15]
    $region77: #{_forward.1} parent=1 // pred_fallthru
      _
    // Predicated region
    $region78: #{_forward.1} parent=1 // pred_check
      _
    $region79: #{_forward.1} parent=1 // pred_check_branch
      %708 = sbr.rel (0) target = $region81
    $region80: #{_forward.1} parent=1 // pred_region
      %709 = dma.done [#allocation4], 128
    $region81: #{_forward.1} parent=1 // pred_fallthru
      _
    // Predicated region
    $region82: #{_forward.1} parent=1 // pred_check
      _
    $region83: #{_forward.1} parent=1 // pred_check_branch
      %711 = sbr.rel (0) target = $region85
    $region84: #{_forward.1} parent=1 // pred_region
      %712 = dma.done [#allocation15], 128
    $region85: #{_forward.1} parent=1 // pred_fallthru
      _
    %713 = vsyncpa [#allocation3], 1
    %714 = vsyncpa [#allocation6], 1
    %715 = vsyncpa [#allocation9], 1
    %716 = vsyncpa [#allocation12], 1
    %717 = vsyncpa [#allocation4], 1
    %718 = vsyncpa [#allocation15], 1

</llo_original>
